<compile_context>
chip_gen: v7x
topology: tpu7x:2x2x1
jax: 0.10.0
libtpu: 0.0.40
codegen_flags: <defaults>
</compile_context>

<pallas_src>
import functools

import jax
import jax.numpy as jnp
import numpy as np
from jax import lax
from jax.experimental import pallas as pl
from jax.experimental.pallas import tpu as pltpu


def _round_up(x, m):
    return ((x + m - 1) // m) * m


# ----------------------------- Pallas kernel -------------------------------

def _gcn_layer_row_kernel(adj_ref, emb_ref, w_ref, b_ref, out_ref, x_ref):
    """One (layer, row-tile) grid step of the fused GCN_S forward.

    adj_ref: (tm, Np)    -- streamed row strip of the dense normalized adj
    emb_ref: (Np, Dp)    -- initial embedding (resident: block index constant)
    w_ref:   (1, Dp, Dp) -- this layer's weight, pre-transposed (Din, Dout)
    b_ref:   (1, 1, Dp)  -- this layer's bias (f32)
    out_ref: (tm, Dp)    -- output row strip (f32); the last layer's write wins
    x_ref:   (2, Np, Dp) -- persistent VMEM ping-pong activation scratch
    """
    li = pl.program_id(0)            # layer index (outer, sequential)
    r = pl.program_id(1)             # row-tile index (inner)
    tm = adj_ref.shape[0]

    # Seed the activation with the embedding table at the very first step.
    @pl.when((li == 0) & (r == 0))
    def _init():
        x_ref[0] = emb_ref[...]

    src = li % 2                     # slot holding layer li's input activation
    dst = (li + 1) % 2               # slot receiving layer li's output

    x = x_ref[src]                   # (Np, Dp), compute dtype
    # graph propagation: adj @ x   (MXU, f32 accumulation)
    h = jnp.dot(adj_ref[...], x, preferred_element_type=jnp.float32)
    # nn.Linear: h @ W^T + b   (W pre-transposed host-side -> no in-kernel .T)
    z = jnp.dot(h.astype(w_ref.dtype), w_ref[0],
                preferred_element_type=jnp.float32) + b_ref[0]
    # F.leaky_relu(negative_slope=0.01) as a single vmax
    a = jnp.maximum(z, 0.01 * z)
    # nn.Dropout -> identity (eval mode / mess_dropout = 0)
    # F.normalize(p=2, dim=1, eps=1e-12): rsqrt with sumsq clamped at eps^2
    sumsq = jnp.sum(a * a, axis=1, keepdims=True)
    y = a * lax.rsqrt(jnp.maximum(sumsq, 1e-24))

    row0 = pl.multiple_of(r * tm, tm)
    x_dst = x_ref.at[dst]
    x_dst[pl.ds(row0, tm), :] = y.astype(x_ref.dtype)
    out_ref[...] = y.astype(out_ref.dtype)


# ---------------------------- per-entity wrapper ----------------------------

def _vmem_capacity_bytes():
    try:
        return int(pltpu.get_tpu_info().vmem_capacity_bytes)
    except Exception:
        return 64 << 20                      # conservative fallback (v7x/TC)


def _pick_tm(n_pad, itemsize):
    # Largest of {512, 256, 128} that divides n_pad and keeps the
    # double-buffered adjacency strip within a ~12 MiB budget.
    budget = 12 << 20
    for cand in (512, 256, 128):
        if n_pad % cand == 0 and cand * n_pad * itemsize * 2 <= budget:
            return cand
    return 128


@functools.partial(jax.jit, static_argnames=("n_rows", "d_out"))
def _gcn_entity_forward(adj_p, emb_p, w_p, b_p, *, n_rows, d_out):
    n_pad, d_pad = emb_p.shape
    n_layers = w_p.shape[0]
    itemsize = jnp.dtype(adj_p.dtype).itemsize
    tm = _pick_tm(n_pad, itemsize)
    grid = (n_layers, n_pad // tm)

    # VMEM budget: double-buffered blocks + persistent activation scratch.
    # TODO(synk): for extremely large N the resident (2, Np, Dp) activation
    #   itself would need column tiling; not required at recsys scales.
    required = (
        2 * tm * n_pad * itemsize            # adj strip (double-buffered)
        + 2 * n_pad * d_pad * itemsize       # embedding (resident block)
        + 2 * d_pad * d_pad * itemsize       # weight block
        + 2 * d_pad * 4                      # bias block
        + 2 * tm * d_pad * 4                 # output strip
        + 2 * n_pad * d_pad * itemsize       # ping-pong activation scratch
    )
    vmem_limit = int(min(max(2 * required + (8 << 20), 32 << 20),
                         int(0.8 * _vmem_capacity_bytes())))

    cost = pl.CostEstimate(
        flops=2 * n_layers * (n_pad * n_pad * d_pad + n_pad * d_pad * d_pad),
        transcendentals=n_layers * n_pad,
        bytes_accessed=(n_layers * n_pad * n_pad * itemsize   # adj re-streamed per layer
                        + n_pad * d_pad * itemsize
                        + n_layers * d_pad * d_pad * itemsize
                        + n_layers * d_pad * 4
                        + n_pad * d_pad * 4),
    )

    out = pl.pallas_call(
        _gcn_layer_row_kernel,
        out_shape=jax.ShapeDtypeStruct((n_pad, d_pad), jnp.float32),
        grid=grid,
        in_specs=[
            pl.BlockSpec((tm, n_pad), lambda li, r: (r, 0)),            # adj strip
            pl.BlockSpec((n_pad, d_pad), lambda li, r: (0, 0)),         # embedding
            pl.BlockSpec((1, d_pad, d_pad), lambda li, r: (li, 0, 0)),  # weight
            pl.BlockSpec((1, 1, d_pad), lambda li, r: (li, 0, 0)),      # bias
        ],
        out_specs=pl.BlockSpec((tm, d_pad), lambda li, r: (r, 0)),
        scratch_shapes=[pltpu.VMEM((2, n_pad, d_pad), adj_p.dtype)],
        compiler_params=pltpu.CompilerParams(
            # Layer axis is a dependency chain; all row tiles of layer li must
            # finish before layer li+1 reads the shared activation scratch,
            # so both axes are sequential on one TensorCore.
            dimension_semantics=("arbitrary", "arbitrary"),
            vmem_limit_bytes=vmem_limit,
        ),
        cost_estimate=cost,
    )(adj_p, emb_p, w_p, b_p)

    return out[:n_rows, :d_out]


# ---------------------------- model-level wrapper ----------------------------

def prepare_gcn_s(user_adj, item_adj, params, compute_dtype=jnp.bfloat16):
    """One-time host-side padding / packing (hoisted out of the forward path)."""
    u_emb = np.asarray(params["embedding_user"], np.float32)
    i_emb = np.asarray(params["embedding_item"], np.float32)
    u_w = [np.asarray(w, np.float32) for w in params["u_w"]]
    u_b = [np.asarray(b, np.float32) for b in params["u_b"]]
    i_w = [np.asarray(w, np.float32) for w in params["i_w"]]
    i_b = [np.asarray(b, np.float32) for b in params["i_b"]]

    n_layers = len(u_w)
    emb_dim = u_emb.shape[1]
    layer_dims = [emb_dim] + [w.shape[0] for w in u_w]
    d_pad = _round_up(max(layer_dims), 128)

    def pack_entity(adj, emb, ws, bs):
        adj = np.asarray(adj, np.float32)
        n = adj.shape[0]
        n_pad = _round_up(n, 128)                    # per-entity padding
        adj_p = np.zeros((n_pad, n_pad), np.float32)
        adj_p[:n, :n] = adj
        emb_p = np.zeros((n_pad, d_pad), np.float32)
        emb_p[:n, :emb_dim] = emb
        w_p = np.zeros((n_layers, d_pad, d_pad), np.float32)
        b_p = np.zeros((n_layers, 1, d_pad), np.float32)
        for li in range(n_layers):
            din, dout = layer_dims[li], layer_dims[li + 1]
            w_p[li, :din, :dout] = ws[li].T          # (Din, Dout): no in-kernel .T
            b_p[li, 0, :dout] = bs[li]
        return {
            "adj": jnp.asarray(adj_p, dtype=compute_dtype),
            "emb": jnp.asarray(emb_p, dtype=compute_dtype),
            "w": jnp.asarray(w_p, dtype=compute_dtype),
            "b": jnp.asarray(b_p, dtype=jnp.float32),   # bias added in f32
            "n": n,
            "d_out": layer_dims[-1],
        }

    return {
        "user": pack_entity(user_adj, u_emb, u_w, u_b),
        "item": pack_entity(item_adj, i_emb, i_w, i_b),
    }


def gcn_s_forward(prep):
    """Replicates GCN_S.forward (eval mode): returns (u_embeddings, i_embeddings)."""
    u = prep["user"]
    i = prep["item"]
    # TODO(synk): on v7x the two entity calls run back-to-back on one TensorCore;
    #   an entity grid axis marked "parallel" (with equal padding) could shard
    #   user/item across the two cores.
    u_out = _gcn_entity_forward(u["adj"], u["emb"], u["w"], u["b"],
                                n_rows=u["n"], d_out=u["d_out"])
    i_out = _gcn_entity_forward(i["adj"], i["emb"], i["w"], i["b"],
                                n_rows=i["n"], d_out=i["d_out"])
    return u_out, i_out


def gcn_s_forward_ref(user_adj, item_adj, params):
    """Pure-JAX f32 reference (matches the torch module)."""
    def layer(adj, x, w, b):
        h = adj @ x
        z = h @ w.T + b
        a = jnp.where(z >= 0.0, z, 0.01 * z)
        norm = jnp.sqrt(jnp.sum(a * a, axis=1, keepdims=True))
        return a / jnp.maximum(norm, 1e-12)

    u = params["embedding_user"]
    i = params["embedding_item"]
    for wu, bu, wi, bi in zip(params["u_w"], params["u_b"],
                              params["i_w"], params["i_b"]):
        u = layer(user_adj, u, wu, bu)
        i = layer(item_adj, i, wi, bi)
    return u, i


# --------------------------------- main --------------------------------------

if __name__ == "__main__":
    # config (small, deterministic)
    n_users = 64
    n_items = 96
    emb_dim = 32
    gcn_layers = [32, 64]          # config['gcn_config']['layers']
    layer_dims = [emb_dim] + gcn_layers
    n_layers = len(gcn_layers)
    # mess_dropout = [0.0, 0.0] -> identity in this inference kernel

    key = jax.random.PRNGKey(0)
    keys = jax.random.split(key, 4 + 4 * n_layers)
    k_iter = iter(keys)

    # Embeddings: user init N(0, 0.01) (init_emb), item keeps default N(0, 1).
    emb_user = 0.01 * jax.random.normal(next(k_iter), (n_users, emb_dim),
                                        dtype=jnp.float32)
    emb_item = jax.random.normal(next(k_iter), (n_items, emb_dim),
                                 dtype=jnp.float32)

    # Dense "sparse" normalized adjacency matrices (row-normalized random).
    ua = jnp.abs(jax.random.uniform(next(k_iter), (n_users, n_users),
                                    dtype=jnp.float32))
    user_adj = ua / jnp.sum(ua, axis=1, keepdims=True)
    ia = jnp.abs(jax.random.uniform(next(k_iter), (n_items, n_items),
                                    dtype=jnp.float32))
    item_adj = ia / jnp.sum(ia, axis=1, keepdims=True)

    # nn.Linear parameters, PyTorch layout (Dout, Din), deterministic init.
    u_w, u_b, i_w, i_b = [], [], [], []
    for li in range(n_layers):
        din, dout = layer_dims[li], layer_dims[li + 1]
        bound = 1.0 / np.sqrt(din)
        u_w.append(jax.random.uniform(next(k_iter), (dout, din),
                                      minval=-bound, maxval=bound,
                                      dtype=jnp.float32))
        u_b.append(jax.random.uniform(next(k_iter), (dout,),
                                      minval=-bound, maxval=bound,
                                      dtype=jnp.float32))
        i_w.append(jax.random.uniform(next(k_iter), (dout, din),
                                      minval=-bound, maxval=bound,
                                      dtype=jnp.float32))
        i_b.append(jax.random.uniform(next(k_iter), (dout,),
                                      minval=-bound, maxval=bound,
                                      dtype=jnp.float32))

    params = {
        "embedding_user": emb_user,
        "embedding_item": emb_item,
        "u_w": u_w, "u_b": u_b,
        "i_w": i_w, "i_b": i_b,
    }

    u_ref, i_ref = gcn_s_forward_ref(user_adj, item_adj, params)
    u_ref = np.asarray(jax.block_until_ready(u_ref))
    i_ref = np.asarray(jax.block_until_ready(i_ref))

    # float32 mode: exact-semantics check against the reference.
    prep_f32 = prepare_gcn_s(user_adj, item_adj, params,
                             compute_dtype=jnp.float32)
    u32, i32 = gcn_s_forward(prep_f32)
    u32 = np.asarray(jax.block_until_ready(u32))
    i32 = np.asarray(jax.block_until_ready(i32))
    assert u32.shape == (n_users, gcn_layers[-1])
    assert i32.shape == (n_items, gcn_layers[-1])
    np.testing.assert_allclose(u32, u_ref, rtol=1e-3, atol=1e-4)
    np.testing.assert_allclose(i32, i_ref, rtol=1e-3, atol=1e-4)

    # bfloat16 mode (default perf config, f32 accumulation): looser tolerance.
    prep_bf16 = prepare_gcn_s(user_adj, item_adj, params)
    ub, ib = gcn_s_forward(prep_bf16)
    ub = np.asarray(jax.block_until_ready(ub))
    ib = np.asarray(jax.block_until_ready(ib))
    assert ub.shape == (n_users, gcn_layers[-1])
    assert ib.shape == (n_items, gcn_layers[-1])
    np.testing.assert_allclose(ub, u_ref, rtol=5e-2, atol=1e-2)
    np.testing.assert_allclose(ib, i_ref, rtol=5e-2, atol=1e-2)

    print("KERNEL_OK")
</pallas_src>

<mosaic_0001>
module attributes {stable_mosaic.version = 11 : i64} {
  func.func @_gcn_layer_row_kernel(%arg0: i32, %arg1: i32, %arg2: memref<128x128xf32, #tpu.memory_space<vmem>>, %arg3: memref<128x128xf32, #tpu.memory_space<vmem>>, %arg4: memref<1x128x128xf32, #tpu.memory_space<vmem>>, %arg5: memref<1x1x128xf32, #tpu.memory_space<vmem>>, %arg6: memref<128x128xf32, #tpu.memory_space<vmem>>, %arg7: memref<2x128x128xf32, #tpu.memory_space<vmem>>) attributes {dimension_semantics = [#tpu.dimension_semantics<arbitrary>, #tpu.dimension_semantics<arbitrary>], iteration_bounds = array<i64: 2, 1>, scalar_prefetch = 0 : i64, scratch_operands = 1 : i64, tpu.core_type = #tpu.core_type<tc>, window_params = [{transform_indices = @transform_0, window_bounds = array<i64: 128, 128>}, {pipeline_mode = #tpu.pipeline_mode<synchronous>, transform_indices = @transform_1, window_bounds = array<i64: 128, 128>}, {transform_indices = @transform_2, window_bounds = array<i64: 1, 128, 128>}, {transform_indices = @transform_3, window_bounds = array<i64: 1, 1, 128>}, {transform_indices = @transform_4, window_bounds = array<i64: 128, 128>}]} {
    %c0_i32 = arith.constant 0 : i32
    %0 = arith.cmpi eq, %arg0, %c0_i32 : i32
    %c0_i32_0 = arith.constant 0 : i32
    %1 = arith.cmpi eq, %arg1, %c0_i32_0 : i32
    %2 = arith.andi %0, %1 : i1
    %3 = arith.extui %2 : i1 to i32
    %c0_i32_1 = arith.constant 0 : i32
    %4 = arith.cmpi ne, %3, %c0_i32_1 : i32
    scf.if %4 {
      %c0_31 = arith.constant 0 : index
      %c0_32 = arith.constant 0 : index
      %56 = vector.load %arg3[%c0_31, %c0_32] : memref<128x128xf32, #tpu.memory_space<vmem>>, vector<128x128xf32>
      %c0_33 = arith.constant 0 : index
      %c0_34 = arith.constant 0 : index
      %c0_35 = arith.constant 0 : index
      %57 = vector.load %arg7[%c0_33, %c0_34, %c0_35] : memref<2x128x128xf32, #tpu.memory_space<vmem>>, vector<1x128x128xf32>
      %58 = vector.shape_cast %57 : vector<1x128x128xf32> to vector<128x128xf32>
      %59 = vector.shape_cast %56 : vector<128x128xf32> to vector<1x128x128xf32>
      tpu.vector_store %arg7[%c0_33, %c0_34, %c0_35], %59 {strides = array<i32>} : memref<2x128x128xf32, #tpu.memory_space<vmem>>, vector<1x128x128xf32>,
    } else {
    }
    %c2_i32 = arith.constant 2 : i32
    %c0_i32_2 = arith.constant 0 : i32
    %5 = arith.cmpi eq, %c2_i32, %c0_i32_2 : i32
    %c1_i32 = arith.constant 1 : i32
    %6 = arith.select %5, %c1_i32, %c2_i32 : i32
    %7 = arith.remsi %arg0, %6 : i32
    %c0_i32_3 = arith.constant 0 : i32
    %8 = arith.cmpi ne, %7, %c0_i32_3 : i32
    %c0_i32_4 = arith.constant 0 : i32
    %9 = arith.cmpi slt, %7, %c0_i32_4 : i32
    %c0_i32_5 = arith.constant 0 : i32
    %10 = arith.cmpi slt, %6, %c0_i32_5 : i32
    %11 = arith.xori %9, %10 : i1
    %12 = arith.andi %11, %8 : i1
    %13 = arith.addi %7, %6 : i32
    %14 = arith.select %12, %13, %7 : i32
    %c1_i32_6 = arith.constant 1 : i32
    %15 = arith.addi %arg0, %c1_i32_6 : i32
    %c2_i32_7 = arith.constant 2 : i32
    %c0_i32_8 = arith.constant 0 : i32
    %16 = arith.cmpi eq, %c2_i32_7, %c0_i32_8 : i32
    %c1_i32_9 = arith.constant 1 : i32
    %17 = arith.select %16, %c1_i32_9, %c2_i32_7 : i32
    %18 = arith.remsi %15, %17 : i32
    %c0_i32_10 = arith.constant 0 : i32
    %19 = arith.cmpi ne, %18, %c0_i32_10 : i32
    %c0_i32_11 = arith.constant 0 : i32
    %20 = arith.cmpi slt, %18, %c0_i32_11 : i32
    %c0_i32_12 = arith.constant 0 : i32
    %21 = arith.cmpi slt, %17, %c0_i32_12 : i32
    %22 = arith.xori %20, %21 : i1
    %23 = arith.andi %22, %19 : i1
    %24 = arith.addi %18, %17 : i32
    %25 = arith.select %23, %24, %18 : i32
    %26 = arith.index_cast %14 : i32 to index
    %c0 = arith.constant 0 : index
    %c0_13 = arith.constant 0 : index
    %27 = vector.load %arg7[%26, %c0, %c0_13] : memref<2x128x128xf32, #tpu.memory_space<vmem>>, vector<1x128x128xf32>
    %28 = vector.shape_cast %27 : vector<1x128x128xf32> to vector<128x128xf32>
    %c0_14 = arith.constant 0 : index
    %c0_15 = arith.constant 0 : index
    %29 = vector.load %arg2[%c0_14, %c0_15] : memref<128x128xf32, #tpu.memory_space<vmem>>, vector<128x128xf32>
    %cst = arith.constant dense<0.000000e+00> : vector<128x128xf32>
    %30 = tpu.matmul %29, %28, %cst {dimension_numbers = #tpu.dot_dimension_numbers<[1], [0], [0], [1], [0, 0, 1, 1], [], []>} : vector<128x128xf32>, vector<128x128xf32>, vector<128x128xf32> -> vector<128x128xf32>
    %c0_16 = arith.constant 0 : index
    %c0_17 = arith.constant 0 : index
    %c0_18 = arith.constant 0 : index
    %31 = vector.load %arg4[%c0_16, %c0_17, %c0_18] : memref<1x128x128xf32, #tpu.memory_space<vmem>>, vector<1x128x128xf32>
    %32 = vector.shape_cast %31 : vector<1x128x128xf32> to vector<128x128xf32>
    %cst_19 = arith.constant dense<0.000000e+00> : vector<128x128xf32>
    %33 = tpu.matmul %30, %32, %cst_19 {dimension_numbers = #tpu.dot_dimension_numbers<[1], [0], [0], [1], [0, 0, 1, 1], [], []>} : vector<128x128xf32>, vector<128x128xf32>, vector<128x128xf32> -> vector<128x128xf32>
    %c0_20 = arith.constant 0 : index
    %c0_21 = arith.constant 0 : index
    %c0_22 = arith.constant 0 : index
    %34 = vector.load %arg5[%c0_20, %c0_21, %c0_22] : memref<1x1x128xf32, #tpu.memory_space<vmem>>, vector<1x1x128xf32>
    %35 = vector.shape_cast %34 : vector<1x1x128xf32> to vector<1x128xf32>
    %36 = vector.broadcast %35 : vector<1x128xf32> to vector<128x128xf32>
    %37 = arith.addf %33, %36 : vector<128x128xf32>
    %cst_23 = arith.constant 0.00999999977 : f32
    %38 = vector.broadcast %cst_23 : f32 to vector<128x128xf32>
    %39 = arith.mulf %38, %37 : vector<128x128xf32>
    %40 = arith.maximumf %37, %39 : vector<128x128xf32>
    %41 = arith.mulf %40, %40 : vector<128x128xf32>
    %cst_24 = arith.constant dense<0.000000e+00> : vector<128xf32>
    %42 = vector.multi_reduction <add>, %41, %cst_24 [1] : vector<128x128xf32> to vector<128xf32>
    %43 = vector.shape_cast %42 : vector<128xf32> to vector<128x1xf32>
    %cst_25 = arith.constant 1.000000e-24 : f32
    %44 = vector.broadcast %cst_25 : f32 to vector<128x1xf32>
    %45 = arith.maximumf %43, %44 : vector<128x1xf32>
    %46 = math.rsqrt %45 : vector<128x1xf32>
    %47 = vector.broadcast %46 : vector<128x1xf32> to vector<128x128xf32>
    %48 = arith.mulf %40, %47 : vector<128x128xf32>
    %c128_i32 = arith.constant 128 : i32
    %49 = arith.muli %arg1, %c128_i32 : i32
    %50 = tpu.assume_multiple %49, 128 : i32
    %c0_i32_26 = arith.constant 0 : i32
    %c0_i32_27 = arith.constant 0 : i32
    %51 = tpu.memref_slice %arg7[%25, %c0_i32_26, %c0_i32_27] : memref<2x128x128xf32, #tpu.memory_space<vmem>> -> memref<1x128x128xf32, #tpu.memory_space<vmem>>
    %52 = tpu.memref_squeeze %51 : memref<1x128x128xf32, #tpu.memory_space<vmem>> -> memref<128x128xf32, #tpu.memory_space<vmem>>
    %53 = arith.index_cast %50 : i32 to index
    %c0_28 = arith.constant 0 : index
    %54 = vector.load %52[%53, %c0_28] : memref<128x128xf32, #tpu.memory_space<vmem>>, vector<128x128xf32>
    tpu.vector_store %52[%53, %c0_28], %48 {strides = array<i32>} : memref<128x128xf32, #tpu.memory_space<vmem>>, vector<128x128xf32>,
    %c0_29 = arith.constant 0 : index
    %c0_30 = arith.constant 0 : index
    %55 = vector.load %arg6[%c0_29, %c0_30] : memref<128x128xf32, #tpu.memory_space<vmem>>, vector<128x128xf32>
    tpu.vector_store %arg6[%c0_29, %c0_30], %48 {strides = array<i32>} : memref<128x128xf32, #tpu.memory_space<vmem>>, vector<128x128xf32>,
    return
  }
  func.func @transform_0(%arg0: i32, %arg1: i32) -> (i32, i32) {
    %c0_i32 = arith.constant 0 : i32
    %c0_i32_0 = arith.constant 0 : i32
    return %arg1, %c0_i32 : i32, i32
  }
  func.func @transform_1(%arg0: i32, %arg1: i32) -> (i32, i32) {
    %c0_i32 = arith.constant 0 : i32
    %c0_i32_0 = arith.constant 0 : i32
    %c0_i32_1 = arith.constant 0 : i32
    return %c0_i32, %c0_i32_0 : i32, i32
  }
  func.func @transform_2(%arg0: i32, %arg1: i32) -> (i32, i32, i32) {
    %c0_i32 = arith.constant 0 : i32
    %c0_i32_0 = arith.constant 0 : i32
    %c0_i32_1 = arith.constant 0 : i32
    return %arg0, %c0_i32, %c0_i32_0 : i32, i32, i32
  }
  func.func @transform_3(%arg0: i32, %arg1: i32) -> (i32, i32, i32) {
    %c0_i32 = arith.constant 0 : i32
    %c0_i32_0 = arith.constant 0 : i32
    %c0_i32_1 = arith.constant 0 : i32
    return %arg0, %c0_i32, %c0_i32_0 : i32, i32, i32
  }
  func.func @transform_4(%arg0: i32, %arg1: i32) -> (i32, i32) {
    %c0_i32 = arith.constant 0 : i32
    %c0_i32_0 = arith.constant 0 : i32
    return %arg1, %c0_i32 : i32, i32
  }
}

</mosaic_0001>

<llo_original>
// kernel: _gcn_entity_forward.1
$region0: #{_gcn_entity_forward.1}
  #allocation0 [shape = 'u32[]', space=smem, size = 0x4, offset = 0x4, fixed_abs, tag = 'smem constant byte address 0x4 - core index']
  #allocation1 [shape = 'u32[144,128]{1,0:T(1,128)}', space=vmem, size = 0x12000, scoped, tag = 'internal scratch']
  #allocation2 [shape = 'f32[2,128,128]{2,1,0:T(8,128)}', space=vmem, size = 0x20000, scoped, tag = 'scratch operand']
  %s0 = inlined_call_operand.hbm [shape: f32[128,128], index: 0, kind: input, shape index: {}]
  %s1 = inlined_call_operand.hbm [shape: f32[128,128], index: 1, kind: input, shape index: {}]
  %s2 = inlined_call_operand.hbm [shape: f32[2,128,128], index: 2, kind: input, shape index: {}]
  %s3 = inlined_call_operand.vmem [shape: f32[2,1,128], index: 3, kind: input, shape index: {}]
  %s4 = inlined_call_operand.vmem [shape: f32[128,128], index: 4, kind: output, shape index: {}]
  %s5 = sld [smem:[#allocation0]]
  $region65: #{_gcn_entity_forward.1} parent=0
    _
  %s7 = ssub.s32 1, %s5
  %s8 = scalar_select 0, %s7, %s5
  $region1: #{_gcn_entity_forward.1} parent=0
    #allocation3 [shape = 'u8[65536]{0}', space=vmem, size = 0x10000, scoped, tag = 'input window, operand 0, single buffered']
    #allocation4 [shape = 's32[2]{0}', space=sflag, size = 0x8, scoped, tag = 'scoped memory for _gcn_entity_forward.1']
    #allocation5 [shape = 'u8[65536]{0}', space=vmem, size = 0x10000, scoped, tag = 'input window, operand 1, single buffered']
    #allocation6 [shape = 's32[1]{0}', space=sflag, size = 0x4, scoped, tag = 'scoped memory for _gcn_entity_forward.1']
    #allocation7 [shape = 'u8[131072]{0}', space=vmem, size = 0x20000, scoped, tag = 'input window, operand 2']
    %9 = vsyncpa [#allocation4], 0
    %10 = vsyncpa [#allocation6], 0
    loop: start=0, step=1, limit=4
    $region2: #{_gcn_entity_forward.1} parent=1 // loop_pre_header
      _
    $region3: #{_gcn_entity_forward.1} parent=1 // loop_header
      %s12 = sphi 0, %s16
      %p13 = scmp.ge.s32.totalorder %s12, 4
      %s19 = sphi 0, %s31
      %s20 = sphi 0, %s27
      %s21 = sphi 0, %s19
      %s22 = sphi 0, %s20
      %s23 = sphi 0, %s21
      %s24 = sphi 0, %s22
      %s34 = sphi 0, %s36
      %s37 = sphi 0, %s34
      %s38 = sphi 0, %s37
      %s54 = sphi 0, %s38
      %s58 = sphi 0, %s58
      %s60 = sphi 0, %s58
      %s61 = sphi 0, %s60
      %s75 = sphi 0, %s61
      %s81 = sphi 0, %s83
      %s84 = sphi 0, %s81
      %s85 = sphi 0, %s84
      %s101 = sphi 0, %s85
      %s107 = sphi 0, %s109
      %s110 = sphi 0, %s107
      %s111 = sphi 0, %s110
      %s127 = sphi 0, %s111
      %s133 = sphi 0, %s135
      %s136 = sphi 0, %s133
      %s137 = sphi 0, %s136
      %s153 = sphi 0, %s137
    $region4: #{_gcn_entity_forward.1} parent=1 // loop_header_branch
      %15 = sbr.rel (%p13) target = $region8
    $region5: #{_gcn_entity_forward.1} parent=1 // loop_body
      %s17 = ssub.s32 %s12, 1
      %s18 = ssub.s32 %s12, 2
      %s25 = sadd.s32 1, %s20
      %p26 = scmp.ge.s32.totalorder %s25, 1
      %s27 = scalar_select %p26, 0, %s25
      %s28 = sadd.s32 1, %s19
      %s29 = scalar_select %p26, %s28, %s19
      %p30 = scmp.ge.s32.totalorder %s29, 2
      %s31 = scalar_select %p30, 0, %s29
      %s32 = ssub.s32 %s20, %s27
      %p33 = scmp.eq.s32.totalorder %s32, 0
      %s35 = sadd.s32 %s34, 1
      %s36 = scalar_select %p33, %s34, %s35
      %p39 = pneg %p33
      %p40 = scmp.eq.s32.totalorder %s12, 1
      %p41 = por %p39, %p40
      %p42 = scmp.ne.s32.totalorder %s34, %s37
      %p43 = scmp.eq.s32.totalorder %s12, 0
      %p44 = por %p42, %p43
      %p45 = scmp.ne.s32.totalorder %s34, %s37
      %p46 = scmp.eq.s32.totalorder %s17, 1
      %p47 = por %p45, %p46
      %p48 = scmp.ne.s32.totalorder %s37, %s38
      %p49 = scmp.eq.s32.totalorder %s17, 0
      %p50 = por %p48, %p49
      %p51 = scmp.ne.s32.totalorder %s37, %s38
      %p52 = scmp.eq.s32.totalorder %s18, 1
      %p53 = por %p51, %p52
      %p55 = scmp.ne.s32.totalorder %s38, %s54
      %p56 = scmp.eq.s32.totalorder %s18, 0
      %p57 = por %p55, %p56
      %s59 = sadd.s32 %s58, 1
      %p62 = scmp.eq.s32.totalorder %s12, 1
      %p63 = scmp.ne.s32.totalorder %s58, %s60
      %p64 = scmp.eq.s32.totalorder %s12, 0
      %p65 = por %p63, %p64
      %p66 = scmp.ne.s32.totalorder %s58, %s60
      %p67 = scmp.eq.s32.totalorder %s17, 1
      %p68 = por %p66, %p67
      %p69 = scmp.ne.s32.totalorder %s60, %s61
      %p70 = scmp.eq.s32.totalorder %s17, 0
      %p71 = por %p69, %p70
      %p72 = scmp.ne.s32.totalorder %s60, %s61
      %p73 = scmp.eq.s32.totalorder %s18, 1
      %p74 = por %p72, %p73
      %p76 = scmp.ne.s32.totalorder %s61, %s75
      %p77 = scmp.eq.s32.totalorder %s18, 0
      %p78 = por %p76, %p77
      %s79 = ssub.s32 %s19, %s31
      %p80 = scmp.eq.s32.totalorder %s79, 0
      %s82 = sadd.s32 %s81, 1
      %s83 = scalar_select %p80, %s81, %s82
      %p86 = pneg %p80
      %p87 = scmp.eq.s32.totalorder %s12, 1
      %p88 = por %p86, %p87
      %p89 = scmp.ne.s32.totalorder %s81, %s84
      %p90 = scmp.eq.s32.totalorder %s12, 0
      %p91 = por %p89, %p90
      %p92 = scmp.ne.s32.totalorder %s81, %s84
      %p93 = scmp.eq.s32.totalorder %s17, 1
      %p94 = por %p92, %p93
      %p95 = scmp.ne.s32.totalorder %s84, %s85
      %p96 = scmp.eq.s32.totalorder %s17, 0
      %p97 = por %p95, %p96
      %p98 = scmp.ne.s32.totalorder %s84, %s85
      %p99 = scmp.eq.s32.totalorder %s18, 1
      %p100 = por %p98, %p99
      %p102 = scmp.ne.s32.totalorder %s85, %s101
      %p103 = scmp.eq.s32.totalorder %s18, 0
      %p104 = por %p102, %p103
      %s105 = ssub.s32 %s19, %s31
      %p106 = scmp.eq.s32.totalorder %s105, 0
      %s108 = sadd.s32 %s107, 1
      %s109 = scalar_select %p106, %s107, %s108
      %p112 = pneg %p106
      %p113 = scmp.eq.s32.totalorder %s12, 1
      %p114 = por %p112, %p113
      %p115 = scmp.ne.s32.totalorder %s107, %s110
      %p116 = scmp.eq.s32.totalorder %s12, 0
      %p117 = por %p115, %p116
      %p118 = scmp.ne.s32.totalorder %s107, %s110
      %p119 = scmp.eq.s32.totalorder %s17, 1
      %p120 = por %p118, %p119
      %p121 = scmp.ne.s32.totalorder %s110, %s111
      %p122 = scmp.eq.s32.totalorder %s17, 0
      %p123 = por %p121, %p122
      %p124 = scmp.ne.s32.totalorder %s110, %s111
      %p125 = scmp.eq.s32.totalorder %s18, 1
      %p126 = por %p124, %p125
      %p128 = scmp.ne.s32.totalorder %s111, %s127
      %p129 = scmp.eq.s32.totalorder %s18, 0
      %p130 = por %p128, %p129
      %s131 = ssub.s32 %s20, %s27
      %p132 = scmp.eq.s32.totalorder %s131, 0
      %s134 = sadd.s32 %s133, 1
      %s135 = scalar_select %p132, %s133, %s134
      %p138 = pneg %p132
      %p139 = scmp.eq.s32.totalorder %s12, 1
      %p140 = por %p138, %p139
      %p141 = scmp.ne.s32.totalorder %s133, %s136
      %p142 = scmp.eq.s32.totalorder %s12, 0
      %p143 = por %p141, %p142
      %p144 = scmp.ne.s32.totalorder %s133, %s136
      %p145 = scmp.eq.s32.totalorder %s17, 1
      %p146 = por %p144, %p145
      %p147 = scmp.ne.s32.totalorder %s136, %s137
      %p148 = scmp.eq.s32.totalorder %s17, 0
      %p149 = por %p147, %p148
      %p150 = scmp.ne.s32.totalorder %s136, %s137
      %p151 = scmp.eq.s32.totalorder %s18, 1
      %p152 = por %p150, %p151
      %p154 = scmp.ne.s32.totalorder %s137, %s153
      %p155 = scmp.eq.s32.totalorder %s18, 0
      %p156 = por %p154, %p155
      %p157 = scmp.le.s32.totalorder 1, %s12
      %p158 = scmp.lt.s32.totalorder %s12, 3
      %p159 = pnand %p157, %p158
      %p160 = pneg %p159
      // Predicated region
      $region9: #{_gcn_entity_forward.1} parent=5 // pred_check
        _
      $region10: #{_gcn_entity_forward.1} parent=5 // pred_check_branch
        %162 = sbr.rel (%p159) target = $region12
      $region11: #{_gcn_entity_forward.1} parent=5 // pred_region
        %s163 = ssub.s32 %s12, 1
        // Predicated region
        $region13: #{_gcn_entity_forward.1} parent=11 // pred_check
          %p164 = pneg %p50
        $region14: #{_gcn_entity_forward.1} parent=11 // pred_check_branch
          %166 = sbr.rel (%p164) target = $region16
        $region15: #{_gcn_entity_forward.1} parent=11 // pred_region
          %s167 = smul.u32 16, %s22
          %s169 = ssub.s32 2048, 2048
          %170 = vsyncadd [#allocation4], %s169
          %s171 = smul.addr %s167, 128
          %s172 = scalar_lea.hbm %s0, %s171
          %s173 = sshll.u32 [#allocation3], 4
          %s174 = int_to_ptr.vmem [resolvable:$true] %s173
          %179 = dma.hbm_to_vmem [thread:$0]  %s172, 2048, %s174, [#allocation4], 128, 128, 8
        $region16: #{_gcn_entity_forward.1} parent=11 // pred_fallthru
          _
        // Predicated region
        $region17: #{_gcn_entity_forward.1} parent=11 // pred_check
          %p180 = pneg %p71
        $region18: #{_gcn_entity_forward.1} parent=11 // pred_check_branch
          %182 = sbr.rel (%p180) target = $region20
        $region19: #{_gcn_entity_forward.1} parent=11 // pred_region
          %s184 = ssub.s32 2048, 2048
          %185 = vsyncadd [#allocation6], %s184
          %s186 = sshll.u32 [#allocation5], 4
          %s187 = int_to_ptr.vmem [resolvable:$true] %s186
          %192 = dma.hbm_to_vmem [thread:$0]  %s1, 2048, %s187, [#allocation6], 128, 128, 8
        $region20: #{_gcn_entity_forward.1} parent=11 // pred_fallthru
          _
      $region12: #{_gcn_entity_forward.1} parent=5 // pred_fallthru
        _
      %p193 = scmp.lt.s32.totalorder %s12, 2
      // Predicated region
      $region21: #{_gcn_entity_forward.1} parent=5 // pred_check
        %p194 = pneg %p193
      $region22: #{_gcn_entity_forward.1} parent=5 // pred_check_branch
        %196 = sbr.rel (%p194) target = $region24
      $region23: #{_gcn_entity_forward.1} parent=5 // pred_region
        // Predicated region
        $region25: #{_gcn_entity_forward.1} parent=23 // pred_check
          %p197 = pneg %p91
        $region26: #{_gcn_entity_forward.1} parent=23 // pred_check_branch
          %199 = sbr.rel (%p197) target = $region28
        $region27: #{_gcn_entity_forward.1} parent=23 // pred_region
          %s200 = sand.u32 %s12, 1
          %s201 = scalar_lea.sflag [#allocation4], %s200
          %s202 = sand.u32 %s81, 1
          %s203 = smul.addr %s202, 128
          %s204 = scalar_lea.vmem [#allocation7], %s203
          %s206 = ssub.s32 2048, 2048
          %207 = vsyncadd %s201, %s206
          %s208 = smul.addr %s19, 16
          %s209 = smul.addr %s208, 128
          %s210 = scalar_lea.hbm %s2, %s209
          %s211 = sshll.u32 %s204, 4
          %s212 = int_to_ptr.vmem [resolvable:$true] %s211
          %217 = dma.hbm_to_vmem [thread:$0]  %s210, 2048, %s212, %s201, 128, 128, 8
        $region28: #{_gcn_entity_forward.1} parent=23 // pred_fallthru
          _
        // Predicated region
        $region29: #{_gcn_entity_forward.1} parent=23 // pred_check
          %p218 = pneg %p117
        $region30: #{_gcn_entity_forward.1} parent=23 // pred_check_branch
          %220 = sbr.rel (%p218) target = $region32
        $region31: #{_gcn_entity_forward.1} parent=23 // pred_region
          %p221 = scmp.lt.s32.totalorder %s19, 1
          %s222 = scalar_select %p221, %s19, 1
          %s223 = scalar_lea.vmem %s3, %s222
        $region32: #{_gcn_entity_forward.1} parent=23 // pred_fallthru
          _
      $region24: #{_gcn_entity_forward.1} parent=5 // pred_fallthru
        _
      %p224 = scmp.le.s32.totalorder 1, %s12
      %p225 = scmp.lt.s32.totalorder %s12, 3
      %p226 = pnand %p224, %p225
      %p227 = pneg %p226
      // Predicated region
      $region33: #{_gcn_entity_forward.1} parent=5 // pred_check
        _
      $region34: #{_gcn_entity_forward.1} parent=5 // pred_check_branch
        %229 = sbr.rel (%p226) target = $region36
      $region35: #{_gcn_entity_forward.1} parent=5 // pred_region
        %s230 = ssub.s32 %s12, 1
        // Predicated region
        $region37: #{_gcn_entity_forward.1} parent=35 // pred_check
          %p231 = pneg %p50
        $region38: #{_gcn_entity_forward.1} parent=35 // pred_check_branch
          %233 = sbr.rel (%p231) target = $region40
        $region39: #{_gcn_entity_forward.1} parent=35 // pred_region
          %234 = dma.done [#allocation4], 2048
        $region40: #{_gcn_entity_forward.1} parent=35 // pred_fallthru
          _
        // Predicated region
        $region41: #{_gcn_entity_forward.1} parent=35 // pred_check
          %p235 = pneg %p71
        $region42: #{_gcn_entity_forward.1} parent=35 // pred_check_branch
          %237 = sbr.rel (%p235) target = $region44
        $region43: #{_gcn_entity_forward.1} parent=35 // pred_region
          %238 = dma.done [#allocation6], 2048
        $region44: #{_gcn_entity_forward.1} parent=35 // pred_fallthru
          _
        %s239 = sand.u32 %s17, 1
        %s240 = scalar_lea.sflag [#allocation4], %s239
        %s241 = sand.u32 %s84, 1
        %s242 = smul.addr %s241, 128
        %s243 = scalar_lea.vmem [#allocation7], %s242
        // Predicated region
        $region45: #{_gcn_entity_forward.1} parent=35 // pred_check
          %p244 = pneg %p97
        $region46: #{_gcn_entity_forward.1} parent=35 // pred_check_branch
          %246 = sbr.rel (%p244) target = $region48
        $region47: #{_gcn_entity_forward.1} parent=35 // pred_region
          %247 = dma.done %s240, 2048
        $region48: #{_gcn_entity_forward.1} parent=35 // pred_fallthru
          _
        %p248 = pneg %p50
        %p249 = pneg %p47
        %p250 = pneg %p71
        %p251 = pneg %p68
        %s252 = sand.u32 %s17, 1
        %s253 = scalar_lea.sflag [#allocation4], %s252
        %s254 = sand.u32 %s84, 1
        %s255 = smul.addr %s254, 128
        %s256 = scalar_lea.vmem [#allocation7], %s255
        %p257 = pneg %p97
        %p258 = pneg %p94
        %p259 = scmp.lt.s32.totalorder %s21, 1
        %s260 = scalar_select %p259, %s21, 1
        %s261 = scalar_lea.vmem %s3, %s260
        %p262 = pneg %p123
        %p263 = pneg %p120
        %p264 = pneg %p149
        %p265 = pneg %p146
        %s266 = smul.u32 16, %s22
        %p267 = scmp.lt.s32.totalorder %s266, 15
        %s268 = scalar_select %p267, %s266, 15
        %s269 = smul.addr %s268, 8
        %s270 = scalar_lea.vmem %s4, %s269
        %s271 = smul.u32 16, %s22
        %p272 = scmp.lt.s32.totalorder %s21, 1
        %s273 = scalar_select %p272, %s21, 1
        %s274 = scalar_lea.vmem %s3, %s273
        %s275 = smul.u32 16, %s22
        %p276 = scmp.lt.s32.totalorder %s275, 15
        %s277 = scalar_select %p276, %s275, 15
        %s278 = smul.addr %s277, 8
        %s279 = scalar_lea.vmem %s4, %s278
        %s280 = smul.u32 16, %s22
        %p281 = scmp.eq.s32.totalorder %s21, 0
        %p282 = scmp.eq.s32.totalorder %s22, 0
        %p283 = pnand %p281, %p282
        %p284 = pneg %p283
        // Predicated region
        $region49: #{_gcn_entity_forward.1} parent=35 // pred_check
          _
        $region50: #{_gcn_entity_forward.1} parent=35 // pred_check_branch
          %286 = sbr.rel (%p283) target = $region52
        $region51: #{_gcn_entity_forward.1} parent=35 // pred_region
          %v287 = vld [vmem:[#allocation5] sm:$0xff]
          %v288 = vld [vmem:[#allocation5 + $0x8] sm:$0xff]
          %v289 = vld [vmem:[#allocation5 + $0x10] sm:$0xff]
          %v290 = vld [vmem:[#allocation5 + $0x18] sm:$0xff]
          %v291 = vld [vmem:[#allocation5 + $0x20] sm:$0xff]
          %v292 = vld [vmem:[#allocation5 + $0x28] sm:$0xff]
          %v293 = vld [vmem:[#allocation5 + $0x30] sm:$0xff]
          %v294 = vld [vmem:[#allocation5 + $0x38] sm:$0xff]
          %v295 = vld [vmem:[#allocation5 + $0x40] sm:$0xff]
          %v296 = vld [vmem:[#allocation5 + $0x48] sm:$0xff]
          %v297 = vld [vmem:[#allocation5 + $0x50] sm:$0xff]
          %v298 = vld [vmem:[#allocation5 + $0x58] sm:$0xff]
          %v299 = vld [vmem:[#allocation5 + $0x60] sm:$0xff]
          %v300 = vld [vmem:[#allocation5 + $0x68] sm:$0xff]
          %v301 = vld [vmem:[#allocation5 + $0x70] sm:$0xff]
          %v302 = vld [vmem:[#allocation5 + $0x78] sm:$0xff]
          %303 = vst [vmem:[#allocation2] sm:$0xff] %v287
          %304 = vst [vmem:[#allocation2 + $0x8] sm:$0xff] %v288
          %305 = vst [vmem:[#allocation2 + $0x10] sm:$0xff] %v289
          %306 = vst [vmem:[#allocation2 + $0x18] sm:$0xff] %v290
          %307 = vst [vmem:[#allocation2 + $0x20] sm:$0xff] %v291
          %308 = vst [vmem:[#allocation2 + $0x28] sm:$0xff] %v292
          %309 = vst [vmem:[#allocation2 + $0x30] sm:$0xff] %v293
          %310 = vst [vmem:[#allocation2 + $0x38] sm:$0xff] %v294
          %311 = vst [vmem:[#allocation2 + $0x40] sm:$0xff] %v295
          %312 = vst [vmem:[#allocation2 + $0x48] sm:$0xff] %v296
          %313 = vst [vmem:[#allocation2 + $0x50] sm:$0xff] %v297
          %314 = vst [vmem:[#allocation2 + $0x58] sm:$0xff] %v298
          %315 = vst [vmem:[#allocation2 + $0x60] sm:$0xff] %v299
          %316 = vst [vmem:[#allocation2 + $0x68] sm:$0xff] %v300
          %317 = vst [vmem:[#allocation2 + $0x70] sm:$0xff] %v301
          %318 = vst [vmem:[#allocation2 + $0x78] sm:$0xff] %v302
        $region52: #{_gcn_entity_forward.1} parent=35 // pred_fallthru
          _
        %p319 = scmp.lt.s32.totalorder %s21, 0
        %s320 = ssub.s32 0, %s21
        %s321 = scalar_select %p319, %s320, %s21
        %s322 = sand.u32 %s321, 1
        %s323 = ssub.s32 0, %s322
        %s324 = scalar_select %p319, %s323, %s322
        %p325 = scmp.ne.s32.totalorder %s324, 0
        %p326 = scmp.lt.s32.totalorder %s324, 0
        %p327 = pnand %p326, %p325
        %p328 = pneg %p327
        %s329 = sadd.s32 %s324, 2
        %s330 = scalar_select %p328, %s329, %s324
        %s331 = sadd.s32 %s21, 1
        %p332 = scmp.lt.s32.totalorder %s331, 0
        %s333 = ssub.s32 0, %s331
        %s334 = scalar_select %p332, %s333, %s331
        %s335 = sand.u32 %s334, 1
        %s336 = ssub.s32 0, %s335
        %s337 = scalar_select %p332, %s336, %s335
        %p338 = scmp.ne.s32.totalorder %s337, 0
        %p339 = scmp.lt.s32.totalorder %s337, 0
        %p340 = pnand %p339, %p338
        %p341 = pneg %p340
        %s342 = sadd.s32 %s337, 2
        %s343 = scalar_select %p341, %s342, %s337
        %s344 = smul.u32 %s330, 128
        %s345 = scalar_lea.vmem [#allocation2], %s344
        %v346 = vld [vmem:[%s345] sm:$0xff]
        %v347 = vld [vmem:[%s345 + $0x8] sm:$0xff]
        %v348 = vld [vmem:[%s345 + $0x10] sm:$0xff]
        %v349 = vld [vmem:[%s345 + $0x18] sm:$0xff]
        %v350 = vld [vmem:[%s345 + $0x20] sm:$0xff]
        %v351 = vld [vmem:[%s345 + $0x28] sm:$0xff]
        %v352 = vld [vmem:[%s345 + $0x30] sm:$0xff]
        %v353 = vld [vmem:[%s345 + $0x38] sm:$0xff]
        %v354 = vld [vmem:[%s345 + $0x40] sm:$0xff]
        %v355 = vld [vmem:[%s345 + $0x48] sm:$0xff]
        %v356 = vld [vmem:[%s345 + $0x50] sm:$0xff]
        %v357 = vld [vmem:[%s345 + $0x58] sm:$0xff]
        %v358 = vld [vmem:[%s345 + $0x60] sm:$0xff]
        %v359 = vld [vmem:[%s345 + $0x68] sm:$0xff]
        %v360 = vld [vmem:[%s345 + $0x70] sm:$0xff]
        %v361 = vld [vmem:[%s345 + $0x78] sm:$0xff]
        %v362 = vld [vmem:[#allocation3] sm:$0xff]
        %v363 = vld [vmem:[#allocation3 + $0x8] sm:$0xff]
        %v364 = vld [vmem:[#allocation3 + $0x10] sm:$0xff]
        %v365 = vld [vmem:[#allocation3 + $0x18] sm:$0xff]
        %v366 = vld [vmem:[#allocation3 + $0x20] sm:$0xff]
        %v367 = vld [vmem:[#allocation3 + $0x28] sm:$0xff]
        %v368 = vld [vmem:[#allocation3 + $0x30] sm:$0xff]
        %v369 = vld [vmem:[#allocation3 + $0x38] sm:$0xff]
        %v370 = vld [vmem:[#allocation3 + $0x40] sm:$0xff]
        %v371 = vld [vmem:[#allocation3 + $0x48] sm:$0xff]
        %v372 = vld [vmem:[#allocation3 + $0x50] sm:$0xff]
        %v373 = vld [vmem:[#allocation3 + $0x58] sm:$0xff]
        %v374 = vld [vmem:[#allocation3 + $0x60] sm:$0xff]
        %v375 = vld [vmem:[#allocation3 + $0x68] sm:$0xff]
        %v376 = vld [vmem:[#allocation3 + $0x70] sm:$0xff]
        %v377 = vld [vmem:[#allocation3 + $0x78] sm:$0xff]
        %378 = vmatprep.subr.mxu0 0.0
        %379 = vmatpush1.msra.mxu0 %v346
        %380 = vmatprep.subr.mxu0 0.0
        %381 = vmatpush1.msra.mxu0 %v347
        %382 = vmatprep.subr.mxu0 0.0
        %383 = vmatpush1.msra.mxu0 %v348
        %384 = vmatprep.subr.mxu0 0.0
        %385 = vmatpush1.msra.mxu0 %v349
        %386 = vmatprep.subr.mxu0 0.0
        %387 = vmatpush1.msra.mxu0 %v350
        %388 = vmatprep.subr.mxu0 0.0
        %389 = vmatpush1.msra.mxu0 %v351
        %390 = vmatprep.subr.mxu0 0.0
        %391 = vmatpush1.msra.mxu0 %v352
        %392 = vmatprep.subr.mxu0 0.0
        %393 = vmatpush1.msra.mxu0 %v353
        %394 = vmatprep.subr.mxu0 0.0
        %395 = vmatpush1.msra.mxu0 %v354
        %396 = vmatprep.subr.mxu0 0.0
        %397 = vmatpush1.msra.mxu0 %v355
        %398 = vmatprep.subr.mxu0 0.0
        %399 = vmatpush1.msra.mxu0 %v356
        %400 = vmatprep.subr.mxu0 0.0
        %401 = vmatpush1.msra.mxu0 %v357
        %402 = vmatprep.subr.mxu0 0.0
        %403 = vmatpush1.msra.mxu0 %v358
        %404 = vmatprep.subr.mxu0 0.0
        %405 = vmatpush1.msra.mxu0 %v359
        %406 = vmatprep.subr.mxu0 0.0
        %407 = vmatpush1.msra.mxu0 %v360
        %408 = vmatprep.subr.mxu0 0.0
        %409 = vmatpush1.msra.mxu0 %v361
        %410 = vmatprep.subr.mxu0 0.0
        %411 = vmatpush1.msra.mxu0 0.0
        %412 = vmatprep.subr.mxu0 0.0
        %413 = vmatpush1.msra.mxu0 0.0
        %414 = vmatprep.subr.mxu0 0.0
        %415 = vmatpush1.msra.mxu0 0.0
        %416 = vmatprep.subr.mxu0 0.0
        %417 = vmatpush1.msra.mxu0 0.0
        %418 = vmatprep.subr.mxu0 0.0
        %419 = vmatpush1.msra.mxu0 0.0
        %420 = vmatprep.subr.mxu0 0.0
        %421 = vmatpush1.msra.mxu0 0.0
        %422 = vmatprep.subr.mxu0 0.0
        %423 = vmatpush1.msra.mxu0 0.0
        %424 = vmatprep.subr.mxu0 0.0
        %425 = vmatpush1.msra.mxu0 0.0
        %426 = vmatprep.subr.mxu0 0.0
        %427 = vmatpush1.msra.mxu0 0.0
        %428 = vmatprep.subr.mxu0 0.0
        %429 = vmatpush1.msra.mxu0 0.0
        %430 = vmatprep.subr.mxu0 0.0
        %431 = vmatpush1.msra.mxu0 0.0
        %432 = vmatprep.subr.mxu0 0.0
        %433 = vmatpush1.msra.mxu0 0.0
        %434 = vmatprep.subr.mxu0 0.0
        %435 = vmatpush1.msra.mxu0 0.0
        %436 = vmatprep.subr.mxu0 0.0
        %437 = vmatpush1.msra.mxu0 0.0
        %438 = vmatprep.subr.mxu0 0.0
        %439 = vmatpush1.msra.mxu0 0.0
        %440 = vmatprep.subr.mxu0 0.0
        %441 = vmatpush1.msra.mxu0 0.0
        %442 = vmatprep.mubr.f32.mxu0 0.0
        %443 = vmatmul.mubr.f32.gmra.mrb[0].mxu0 %v362
        %v444 = vpop.f32.mrb[0].mxu0
        %v445 = vadd.f32 0.0, %v444
        %v446 = vpop.f32.mrb[0].mxu0
        %447 = vmatprep.mubr.f32.mxu0 0.0
        %448 = vmatmul.mubr.f32.gmra.mrb[0].mxu0 %v363
        %v449 = vpop.f32.mrb[0].mxu0
        %v450 = vadd.f32 0.0, %v449
        %v451 = vpop.f32.mrb[0].mxu0
        %452 = vmatprep.mubr.f32.mxu0 0.0
        %453 = vmatmul.mubr.f32.gmra.mrb[0].mxu0 %v364
        %v454 = vpop.f32.mrb[0].mxu0
        %v455 = vadd.f32 0.0, %v454
        %v456 = vpop.f32.mrb[0].mxu0
        %457 = vmatprep.mubr.f32.mxu0 0.0
        %458 = vmatmul.mubr.f32.gmra.mrb[0].mxu0 %v365
        %v459 = vpop.f32.mrb[0].mxu0
        %v460 = vadd.f32 0.0, %v459
        %v461 = vpop.f32.mrb[0].mxu0
        %462 = vmatprep.mubr.f32.mxu0 0.0
        %463 = vmatmul.mubr.f32.gmra.mrb[0].mxu0 %v366
        %v464 = vpop.f32.mrb[0].mxu0
        %v465 = vadd.f32 0.0, %v464
        %v466 = vpop.f32.mrb[0].mxu0
        %467 = vmatprep.mubr.f32.mxu0 0.0
        %468 = vmatmul.mubr.f32.gmra.mrb[0].mxu0 %v367
        %v469 = vpop.f32.mrb[0].mxu0
        %v470 = vadd.f32 0.0, %v469
        %v471 = vpop.f32.mrb[0].mxu0
        %472 = vmatprep.mubr.f32.mxu0 0.0
        %473 = vmatmul.mubr.f32.gmra.mrb[0].mxu0 %v368
        %v474 = vpop.f32.mrb[0].mxu0
        %v475 = vadd.f32 0.0, %v474
        %v476 = vpop.f32.mrb[0].mxu0
        %477 = vmatprep.mubr.f32.mxu0 0.0
        %478 = vmatmul.mubr.f32.gmra.mrb[0].mxu0 %v369
        %v479 = vpop.f32.mrb[0].mxu0
        %v480 = vadd.f32 0.0, %v479
        %v481 = vpop.f32.mrb[0].mxu0
        %482 = vmatprep.mubr.f32.mxu0 0.0
        %483 = vmatmul.mubr.f32.gmra.mrb[0].mxu0 %v370
        %v484 = vpop.f32.mrb[0].mxu0
        %v485 = vadd.f32 0.0, %v484
        %v486 = vpop.f32.mrb[0].mxu0
        %487 = vmatprep.mubr.f32.mxu0 0.0
        %488 = vmatmul.mubr.f32.gmra.mrb[0].mxu0 %v371
        %v489 = vpop.f32.mrb[0].mxu0
        %v490 = vadd.f32 0.0, %v489
        %v491 = vpop.f32.mrb[0].mxu0
        %492 = vmatprep.mubr.f32.mxu0 0.0
        %493 = vmatmul.mubr.f32.gmra.mrb[0].mxu0 %v372
        %v494 = vpop.f32.mrb[0].mxu0
        %v495 = vadd.f32 0.0, %v494
        %v496 = vpop.f32.mrb[0].mxu0
        %497 = vmatprep.mubr.f32.mxu0 0.0
        %498 = vmatmul.mubr.f32.gmra.mrb[0].mxu0 %v373
        %v499 = vpop.f32.mrb[0].mxu0
        %v500 = vadd.f32 0.0, %v499
        %v501 = vpop.f32.mrb[0].mxu0
        %502 = vmatprep.mubr.f32.mxu0 0.0
        %503 = vmatmul.mubr.f32.gmra.mrb[0].mxu0 %v374
        %v504 = vpop.f32.mrb[0].mxu0
        %v505 = vadd.f32 0.0, %v504
        %v506 = vpop.f32.mrb[0].mxu0
        %507 = vmatprep.mubr.f32.mxu0 0.0
        %508 = vmatmul.mubr.f32.gmra.mrb[0].mxu0 %v375
        %v509 = vpop.f32.mrb[0].mxu0
        %v510 = vadd.f32 0.0, %v509
        %v511 = vpop.f32.mrb[0].mxu0
        %512 = vmatprep.mubr.f32.mxu0 0.0
        %513 = vmatmul.mubr.f32.gmra.mrb[0].mxu0 %v376
        %v514 = vpop.f32.mrb[0].mxu0
        %v515 = vadd.f32 0.0, %v514
        %v516 = vpop.f32.mrb[0].mxu0
        %517 = vmatprep.mubr.f32.mxu0 0.0
        %518 = vmatmul.mubr.f32.gmra.mrb[0].mxu0 %v377
        %v519 = vpop.f32.mrb[0].mxu0
        %v520 = vadd.f32 0.0, %v519
        %v521 = vpop.f32.mrb[0].mxu0
        %522 = vdwg.mxu0
        %v523 = vld [vmem:[%s243] sm:$0xff]
        %v524 = vld [vmem:[%s243 + $0x8] sm:$0xff]
        %v525 = vld [vmem:[%s243 + $0x10] sm:$0xff]
        %v526 = vld [vmem:[%s243 + $0x18] sm:$0xff]
        %v527 = vld [vmem:[%s243 + $0x20] sm:$0xff]
        %v528 = vld [vmem:[%s243 + $0x28] sm:$0xff]
        %v529 = vld [vmem:[%s243 + $0x30] sm:$0xff]
        %v530 = vld [vmem:[%s243 + $0x38] sm:$0xff]
        %v531 = vld [vmem:[%s243 + $0x40] sm:$0xff]
        %v532 = vld [vmem:[%s243 + $0x48] sm:$0xff]
        %v533 = vld [vmem:[%s243 + $0x50] sm:$0xff]
        %v534 = vld [vmem:[%s243 + $0x58] sm:$0xff]
        %v535 = vld [vmem:[%s243 + $0x60] sm:$0xff]
        %v536 = vld [vmem:[%s243 + $0x68] sm:$0xff]
        %v537 = vld [vmem:[%s243 + $0x70] sm:$0xff]
        %v538 = vld [vmem:[%s243 + $0x78] sm:$0xff]
        %v539 = vld [vmem:[%s274] sm:$0x1]
        %v541 = vlaneseq
        %v542 = vshrl.u32 %v541, 7
        %v543 = vsub.s32 0, %v542
        %v544 = vrot.slane %v539, %v543
        %546 = vmatprep.subr.mxu0 0.0
        %547 = vmatpush1.msra.mxu0 %v523
        %548 = vmatprep.subr.mxu0 0.0
        %549 = vmatpush1.msra.mxu0 %v524
        %550 = vmatprep.subr.mxu0 0.0
        %551 = vmatpush1.msra.mxu0 %v525
        %552 = vmatprep.subr.mxu0 0.0
        %553 = vmatpush1.msra.mxu0 %v526
        %554 = vmatprep.subr.mxu0 0.0
        %555 = vmatpush1.msra.mxu0 %v527
        %556 = vmatprep.subr.mxu0 0.0
        %557 = vmatpush1.msra.mxu0 %v528
        %558 = vmatprep.subr.mxu0 0.0
        %559 = vmatpush1.msra.mxu0 %v529
        %560 = vmatprep.subr.mxu0 0.0
        %561 = vmatpush1.msra.mxu0 %v530
        %562 = vmatprep.subr.mxu0 0.0
        %563 = vmatpush1.msra.mxu0 %v531
        %564 = vmatprep.subr.mxu0 0.0
        %565 = vmatpush1.msra.mxu0 %v532
        %566 = vmatprep.subr.mxu0 0.0
        %567 = vmatpush1.msra.mxu0 %v533
        %568 = vmatprep.subr.mxu0 0.0
        %569 = vmatpush1.msra.mxu0 %v534
        %570 = vmatprep.subr.mxu0 0.0
        %571 = vmatpush1.msra.mxu0 %v535
        %572 = vmatprep.subr.mxu0 0.0
        %573 = vmatpush1.msra.mxu0 %v536
        %574 = vmatprep.subr.mxu0 0.0
        %575 = vmatpush1.msra.mxu0 %v537
        %576 = vmatprep.subr.mxu0 0.0
        %577 = vmatpush1.msra.mxu0 %v538
        %578 = vmatprep.subr.mxu0 0.0
        %579 = vmatpush1.msra.mxu0 0.0
        %580 = vmatprep.subr.mxu0 0.0
        %581 = vmatpush1.msra.mxu0 0.0
        %582 = vmatprep.subr.mxu0 0.0
        %583 = vmatpush1.msra.mxu0 0.0
        %584 = vmatprep.subr.mxu0 0.0
        %585 = vmatpush1.msra.mxu0 0.0
        %586 = vmatprep.subr.mxu0 0.0
        %587 = vmatpush1.msra.mxu0 0.0
        %588 = vmatprep.subr.mxu0 0.0
        %589 = vmatpush1.msra.mxu0 0.0
        %590 = vmatprep.subr.mxu0 0.0
        %591 = vmatpush1.msra.mxu0 0.0
        %592 = vmatprep.subr.mxu0 0.0
        %593 = vmatpush1.msra.mxu0 0.0
        %594 = vmatprep.subr.mxu0 0.0
        %595 = vmatpush1.msra.mxu0 0.0
        %596 = vmatprep.subr.mxu0 0.0
        %597 = vmatpush1.msra.mxu0 0.0
        %598 = vmatprep.subr.mxu0 0.0
        %599 = vmatpush1.msra.mxu0 0.0
        %600 = vmatprep.subr.mxu0 0.0
        %601 = vmatpush1.msra.mxu0 0.0
        %602 = vmatprep.subr.mxu0 0.0
        %603 = vmatpush1.msra.mxu0 0.0
        %604 = vmatprep.subr.mxu0 0.0
        %605 = vmatpush1.msra.mxu0 0.0
        %606 = vmatprep.subr.mxu0 0.0
        %607 = vmatpush1.msra.mxu0 0.0
        %608 = vmatprep.subr.mxu0 0.0
        %609 = vmatpush1.msra.mxu0 0.0
        %610 = vmatprep.mubr.f32.mxu0 0.0
        %611 = vmatmul.mubr.f32.gmra.mrb[0].mxu0 %v445
        %v612 = vpop.f32.mrb[0].mxu0
        %v613 = vadd.f32 %v544, %v612
        %v614 = vpop.f32.mrb[0].mxu0
        %615 = vmatprep.mubr.f32.mxu0 0.0
        %616 = vmatmul.mubr.f32.gmra.mrb[0].mxu0 %v450
        %v617 = vpop.f32.mrb[0].mxu0
        %v618 = vadd.f32 %v544, %v617
        %v619 = vpop.f32.mrb[0].mxu0
        %620 = vmatprep.mubr.f32.mxu0 0.0
        %621 = vmatmul.mubr.f32.gmra.mrb[0].mxu0 %v455
        %v622 = vpop.f32.mrb[0].mxu0
        %v623 = vadd.f32 %v544, %v622
        %v624 = vpop.f32.mrb[0].mxu0
        %625 = vmatprep.mubr.f32.mxu0 0.0
        %626 = vmatmul.mubr.f32.gmra.mrb[0].mxu0 %v460
        %v627 = vpop.f32.mrb[0].mxu0
        %v628 = vadd.f32 %v544, %v627
        %v629 = vpop.f32.mrb[0].mxu0
        %630 = vmatprep.mubr.f32.mxu0 0.0
        %631 = vmatmul.mubr.f32.gmra.mrb[0].mxu0 %v465
        %v632 = vpop.f32.mrb[0].mxu0
        %v633 = vadd.f32 %v544, %v632
        %v634 = vpop.f32.mrb[0].mxu0
        %635 = vmatprep.mubr.f32.mxu0 0.0
        %636 = vmatmul.mubr.f32.gmra.mrb[0].mxu0 %v470
        %v637 = vpop.f32.mrb[0].mxu0
        %v638 = vadd.f32 %v544, %v637
        %v639 = vpop.f32.mrb[0].mxu0
        %640 = vmatprep.mubr.f32.mxu0 0.0
        %641 = vmatmul.mubr.f32.gmra.mrb[0].mxu0 %v475
        %v642 = vpop.f32.mrb[0].mxu0
        %v643 = vadd.f32 %v544, %v642
        %v644 = vpop.f32.mrb[0].mxu0
        %645 = vmatprep.mubr.f32.mxu0 0.0
        %646 = vmatmul.mubr.f32.gmra.mrb[0].mxu0 %v480
        %v647 = vpop.f32.mrb[0].mxu0
        %v648 = vadd.f32 %v544, %v647
        %v649 = vpop.f32.mrb[0].mxu0
        %650 = vmatprep.mubr.f32.mxu0 0.0
        %651 = vmatmul.mubr.f32.gmra.mrb[0].mxu0 %v485
        %v652 = vpop.f32.mrb[0].mxu0
        %v653 = vadd.f32 %v544, %v652
        %v654 = vpop.f32.mrb[0].mxu0
        %655 = vmatprep.mubr.f32.mxu0 0.0
        %656 = vmatmul.mubr.f32.gmra.mrb[0].mxu0 %v490
        %v657 = vpop.f32.mrb[0].mxu0
        %v658 = vadd.f32 %v544, %v657
        %v659 = vpop.f32.mrb[0].mxu0
        %660 = vmatprep.mubr.f32.mxu0 0.0
        %661 = vmatmul.mubr.f32.gmra.mrb[0].mxu0 %v495
        %v662 = vpop.f32.mrb[0].mxu0
        %v663 = vadd.f32 %v544, %v662
        %v664 = vpop.f32.mrb[0].mxu0
        %665 = vmatprep.mubr.f32.mxu0 0.0
        %666 = vmatmul.mubr.f32.gmra.mrb[0].mxu0 %v500
        %v667 = vpop.f32.mrb[0].mxu0
        %v668 = vadd.f32 %v544, %v667
        %v669 = vpop.f32.mrb[0].mxu0
        %670 = vmatprep.mubr.f32.mxu0 0.0
        %671 = vmatmul.mubr.f32.gmra.mrb[0].mxu0 %v505
        %v672 = vpop.f32.mrb[0].mxu0
        %v673 = vadd.f32 %v544, %v672
        %v674 = vpop.f32.mrb[0].mxu0
        %675 = vmatprep.mubr.f32.mxu0 0.0
        %676 = vmatmul.mubr.f32.gmra.mrb[0].mxu0 %v510
        %v677 = vpop.f32.mrb[0].mxu0
        %v678 = vadd.f32 %v544, %v677
        %v679 = vpop.f32.mrb[0].mxu0
        %680 = vmatprep.mubr.f32.mxu0 0.0
        %681 = vmatmul.mubr.f32.gmra.mrb[0].mxu0 %v515
        %v682 = vpop.f32.mrb[0].mxu0
        %v683 = vadd.f32 %v544, %v682
        %v684 = vpop.f32.mrb[0].mxu0
        %685 = vmatprep.mubr.f32.mxu0 0.0
        %686 = vmatmul.mubr.f32.gmra.mrb[0].mxu0 %v520
        %v687 = vpop.f32.mrb[0].mxu0
        %v688 = vadd.f32 %v544, %v687
        %v689 = vpop.f32.mrb[0].mxu0
        %690 = vdwg.mxu0
        %v691 = vmul.f32 %v613, 0.01
        %v692 = vmul.f32 %v618, 0.01
        %v693 = vmul.f32 %v623, 0.01
        %v694 = vmul.f32 %v628, 0.01
        %v695 = vmul.f32 %v633, 0.01
        %v696 = vmul.f32 %v638, 0.01
        %v697 = vmul.f32 %v643, 0.01
        %v698 = vmul.f32 %v648, 0.01
        %v699 = vmul.f32 %v653, 0.01
        %v700 = vmul.f32 %v658, 0.01
        %v701 = vmul.f32 %v663, 0.01
        %v702 = vmul.f32 %v668, 0.01
        %v703 = vmul.f32 %v673, 0.01
        %v704 = vmul.f32 %v678, 0.01
        %v705 = vmul.f32 %v683, 0.01
        %v706 = vmul.f32 %v688, 0.01
        %v707 = vmax.f32 %v613, %v691
        %v708 = vmax.f32 %v618, %v692
        %v709 = vmax.f32 %v623, %v693
        %v710 = vmax.f32 %v628, %v694
        %v711 = vmax.f32 %v633, %v695
        %v712 = vmax.f32 %v638, %v696
        %v713 = vmax.f32 %v643, %v697
        %v714 = vmax.f32 %v648, %v698
        %v715 = vmax.f32 %v653, %v699
        %v716 = vmax.f32 %v658, %v700
        %v717 = vmax.f32 %v663, %v701
        %v718 = vmax.f32 %v668, %v702
        %v719 = vmax.f32 %v673, %v703
        %v720 = vmax.f32 %v678, %v704
        %v721 = vmax.f32 %v683, %v705
        %v722 = vmax.f32 %v688, %v706
        %v723 = vmul.f32 %v707, %v707
        %v724 = vmul.f32 %v708, %v708
        %v725 = vmul.f32 %v709, %v709
        %v726 = vmul.f32 %v710, %v710
        %v727 = vmul.f32 %v711, %v711
        %v728 = vmul.f32 %v712, %v712
        %v729 = vmul.f32 %v713, %v713
        %v730 = vmul.f32 %v714, %v714
        %v731 = vmul.f32 %v715, %v715
        %v732 = vmul.f32 %v716, %v716
        %v733 = vmul.f32 %v717, %v717
        %v734 = vmul.f32 %v718, %v718
        %v735 = vmul.f32 %v719, %v719
        %v736 = vmul.f32 %v720, %v720
        %v737 = vmul.f32 %v721, %v721
        %v738 = vmul.f32 %v722, %v722
        %739 = vadd.xlane.f32.xlu0 %v723
        %v740 = vpop.xlane.xlu0 %739
        %741 = vadd.xlane.f32.xlu0 %v724
        %v742 = vpop.xlane.xlu0 %741
        %743 = vadd.xlane.f32.xlu0 %v725
        %v744 = vpop.xlane.xlu0 %743
        %745 = vadd.xlane.f32.xlu0 %v726
        %v746 = vpop.xlane.xlu0 %745
        %747 = vadd.xlane.f32.xlu0 %v727
        %v748 = vpop.xlane.xlu0 %747
        %749 = vadd.xlane.f32.xlu0 %v728
        %v750 = vpop.xlane.xlu0 %749
        %751 = vadd.xlane.f32.xlu0 %v729
        %v752 = vpop.xlane.xlu0 %751
        %753 = vadd.xlane.f32.xlu0 %v730
        %v754 = vpop.xlane.xlu0 %753
        %755 = vadd.xlane.f32.xlu0 %v731
        %v756 = vpop.xlane.xlu0 %755
        %757 = vadd.xlane.f32.xlu0 %v732
        %v758 = vpop.xlane.xlu0 %757
        %759 = vadd.xlane.f32.xlu0 %v733
        %v760 = vpop.xlane.xlu0 %759
        %761 = vadd.xlane.f32.xlu0 %v734
        %v762 = vpop.xlane.xlu0 %761
        %763 = vadd.xlane.f32.xlu0 %v735
        %v764 = vpop.xlane.xlu0 %763
        %765 = vadd.xlane.f32.xlu0 %v736
        %v766 = vpop.xlane.xlu0 %765
        %767 = vadd.xlane.f32.xlu0 %v737
        %v768 = vpop.xlane.xlu0 %767
        %769 = vadd.xlane.f32.xlu0 %v738
        %v770 = vpop.xlane.xlu0 %769
        %v771 = vmax.f32 %v740, 1e-24
        %v772 = vmax.f32 %v742, 1e-24
        %v773 = vmax.f32 %v744, 1e-24
        %v774 = vmax.f32 %v746, 1e-24
        %v775 = vmax.f32 %v748, 1e-24
        %v776 = vmax.f32 %v750, 1e-24
        %v777 = vmax.f32 %v752, 1e-24
        %v778 = vmax.f32 %v754, 1e-24
        %v779 = vmax.f32 %v756, 1e-24
        %v780 = vmax.f32 %v758, 1e-24
        %v781 = vmax.f32 %v760, 1e-24
        %v782 = vmax.f32 %v762, 1e-24
        %v783 = vmax.f32 %v764, 1e-24
        %v784 = vmax.f32 %v766, 1e-24
        %v785 = vmax.f32 %v768, 1e-24
        %v786 = vmax.f32 %v770, 1e-24
        %v787 = vrsqrt.pop %v771
        %v788 = vrsqrt.pop %v772
        %v789 = vrsqrt.pop %v773
        %v790 = vrsqrt.pop %v774
        %v791 = vrsqrt.pop %v775
        %v792 = vrsqrt.pop %v776
        %v793 = vrsqrt.pop %v777
        %v794 = vrsqrt.pop %v778
        %v795 = vrsqrt.pop %v779
        %v796 = vrsqrt.pop %v780
        %v797 = vrsqrt.pop %v781
        %v798 = vrsqrt.pop %v782
        %v799 = vrsqrt.pop %v783
        %v800 = vrsqrt.pop %v784
        %v801 = vrsqrt.pop %v785
        %v802 = vrsqrt.pop %v786
        %v803 = vmul.f32 %v707, %v787
        %v804 = vmul.f32 %v708, %v788
        %v805 = vmul.f32 %v709, %v789
        %v806 = vmul.f32 %v710, %v790
        %v807 = vmul.f32 %v711, %v791
        %v808 = vmul.f32 %v712, %v792
        %v809 = vmul.f32 %v713, %v793
        %v810 = vmul.f32 %v714, %v794
        %v811 = vmul.f32 %v715, %v795
        %v812 = vmul.f32 %v716, %v796
        %v813 = vmul.f32 %v717, %v797
        %v814 = vmul.f32 %v718, %v798
        %v815 = vmul.f32 %v719, %v799
        %v816 = vmul.f32 %v720, %v800
        %v817 = vmul.f32 %v721, %v801
        %v818 = vmul.f32 %v722, %v802
        %s819 = smul.u32 %s22, 128
        %s820 = smul.u32 %s343, 128
        %s821 = scalar_lea.vmem [#allocation2], %s820
        %s822 = scalar_lea.vmem %s821, %s819 [#allocation2]
        %823 = vst [vmem:[%s822] sm:$0xff] %v803
        %824 = vst [vmem:[%s822 + $0x8] sm:$0xff] %v804
        %825 = vst [vmem:[%s822 + $0x10] sm:$0xff] %v805
        %826 = vst [vmem:[%s822 + $0x18] sm:$0xff] %v806
        %827 = vst [vmem:[%s822 + $0x20] sm:$0xff] %v807
        %828 = vst [vmem:[%s822 + $0x28] sm:$0xff] %v808
        %829 = vst [vmem:[%s822 + $0x30] sm:$0xff] %v809
        %830 = vst [vmem:[%s822 + $0x38] sm:$0xff] %v810
        %831 = vst [vmem:[%s822 + $0x40] sm:$0xff] %v811
        %832 = vst [vmem:[%s822 + $0x48] sm:$0xff] %v812
        %833 = vst [vmem:[%s822 + $0x50] sm:$0xff] %v813
        %834 = vst [vmem:[%s822 + $0x58] sm:$0xff] %v814
        %835 = vst [vmem:[%s822 + $0x60] sm:$0xff] %v815
        %836 = vst [vmem:[%s822 + $0x68] sm:$0xff] %v816
        %837 = vst [vmem:[%s822 + $0x70] sm:$0xff] %v817
        %838 = vst [vmem:[%s822 + $0x78] sm:$0xff] %v818
        %839 = vst [vmem:[%s279] sm:$0xff] %v803
        %840 = vst [vmem:[%s279 + $0x8] sm:$0xff] %v804
        %841 = vst [vmem:[%s279 + $0x10] sm:$0xff] %v805
        %842 = vst [vmem:[%s279 + $0x18] sm:$0xff] %v806
        %843 = vst [vmem:[%s279 + $0x20] sm:$0xff] %v807
        %844 = vst [vmem:[%s279 + $0x28] sm:$0xff] %v808
        %845 = vst [vmem:[%s279 + $0x30] sm:$0xff] %v809
        %846 = vst [vmem:[%s279 + $0x38] sm:$0xff] %v810
        %847 = vst [vmem:[%s279 + $0x40] sm:$0xff] %v811
        %848 = vst [vmem:[%s279 + $0x48] sm:$0xff] %v812
        %849 = vst [vmem:[%s279 + $0x50] sm:$0xff] %v813
        %850 = vst [vmem:[%s279 + $0x58] sm:$0xff] %v814
        %851 = vst [vmem:[%s279 + $0x60] sm:$0xff] %v815
        %852 = vst [vmem:[%s279 + $0x68] sm:$0xff] %v816
        %853 = vst [vmem:[%s279 + $0x70] sm:$0xff] %v817
        %854 = vst [vmem:[%s279 + $0x78] sm:$0xff] %v818
        %s855 = smul.u32 16, %s22
        %p856 = scmp.lt.s32.totalorder %s855, 15
        %s857 = scalar_select %p856, %s855, 15
        %s858 = smul.addr %s857, 8
        %s859 = scalar_lea.vmem %s4, %s858
        // Predicated region
        $region53: #{_gcn_entity_forward.1} parent=35 // pred_check
          %p860 = pneg %p146
        $region54: #{_gcn_entity_forward.1} parent=35 // pred_check_branch
          %862 = sbr.rel (%p860) target = $region56
        $region55: #{_gcn_entity_forward.1} parent=35 // pred_region
          %s863 = smul.u32 16, %s22
        $region56: #{_gcn_entity_forward.1} parent=35 // pred_fallthru
          _
        // Predicated region
        $region57: #{_gcn_entity_forward.1} parent=35 // pred_check
          %p864 = pneg %p146
        $region58: #{_gcn_entity_forward.1} parent=35 // pred_check_branch
          %866 = sbr.rel (%p864) target = $region60
        $region59: #{_gcn_entity_forward.1} parent=35 // pred_region
          %s867 = smul.u32 16, %s22
          %p868 = scmp.lt.s32.totalorder %s867, 15
          %s869 = scalar_select %p868, %s867, 15
          %s870 = smul.addr %s869, 8
          %s871 = scalar_lea.vmem %s4, %s870
        $region60: #{_gcn_entity_forward.1} parent=35 // pred_fallthru
          _
      $region36: #{_gcn_entity_forward.1} parent=5 // pred_fallthru
        _
      %p872 = scmp.le.s32.totalorder 2, %s12
      // Predicated region
      $region61: #{_gcn_entity_forward.1} parent=5 // pred_check
        %p873 = pneg %p872
      $region62: #{_gcn_entity_forward.1} parent=5 // pred_check_branch
        %875 = sbr.rel (%p873) target = $region64
      $region63: #{_gcn_entity_forward.1} parent=5 // pred_region
        %s876 = ssub.s32 %s12, 2
      $region64: #{_gcn_entity_forward.1} parent=5 // pred_fallthru
        _
    $region6: #{_gcn_entity_forward.1} parent=1 // loop_footer
      %s16 = sadd.s32 1, %s12
    $region7: #{_gcn_entity_forward.1} parent=1 // loop_footer_branch
      %11 = sbr.rel target = $region3
    $region8: #{_gcn_entity_forward.1} parent=1 // loop_exit
      _
    %877 = vsyncpa [#allocation4], 1
    %s878 = scalar_lea.sflag [#allocation4], 1
    %879 = vsyncpa %s878, 1
    %880 = vsyncpa [#allocation6], 1

</llo_original>
